<compile_context>
chip_gen: v7x
topology: tpu7x:2x2x1
jax: 0.10.0
libtpu: 0.0.40
codegen_flags: <defaults>
</compile_context>

<pallas_src>
import jax
import jax.numpy as jnp
from jax import lax
from jax.experimental import pallas as pl
from jax.experimental.pallas import tpu as pltpu

EPS = 1e-5


def _pick_hw_tile(hw, c, target_bytes=2 << 20):
    """Largest multiple-of-128 divisor of hw with a ~2 MiB f32 tile cap."""
    if hw % 128 != 0:
        return hw                                  # full-extent fallback
    max_t = max(128, (target_bytes // (4 * c)) // 128 * 128)
    t = 128
    for cand in range(128, min(hw, max_t) + 1, 128):
        if hw % cand == 0:
            t = cand
    return t


def _make_stats_kernel(hw_total, eps):
    """Accumulate per-channel sum/sumsq; finalize folded affine (scale, bias)."""

    def kernel(x_ref, rho_ref, gamma_ref, beta_ref,
               scale_ref, bias_ref, s1_ref, s2_ref):
        t = pl.program_id(1)

        @pl.when(t == 0)
        def _init():
            s1_ref[...] = jnp.zeros_like(s1_ref)
            s2_ref[...] = jnp.zeros_like(s2_ref)

        x = x_ref[0].astype(jnp.float32)                     # (C, T)
        s1_ref[...] += jnp.sum(x, axis=1, keepdims=True)      # (C, 1)
        s2_ref[...] += jnp.sum(x * x, axis=1, keepdims=True)  # (C, 1)

        @pl.when(t == pl.num_programs(1) - 1)
        def _finalize():
            s1 = s1_ref[...]                                  # (C, 1)
            s2 = s2_ref[...]
            c = s1.shape[0]

            # Instance-norm stats (per channel, unbiased over HW).
            n_in = float(hw_total)
            in_mean = s1 / n_in
            in_var = (s2 - s1 * in_mean) / (n_in - 1.0)
            inv_in = lax.rsqrt(in_var + eps)

            # Layer-norm stats (over C*HW, unbiased) from the per-channel sums.
            n_ln = float(hw_total * c)
            ln_s1 = jnp.sum(s1, axis=0, keepdims=True)        # (1, 1)
            ln_s2 = jnp.sum(s2, axis=0, keepdims=True)
            ln_mean = ln_s1 / n_ln
            ln_var = (ln_s2 - ln_s1 * ln_mean) / (n_ln - 1.0)
            inv_ln = lax.rsqrt(ln_var + eps)

            rho = rho_ref[...]                                # (C, 1)
            gamma = gamma_ref[0]                              # (C, 1)
            beta = beta_ref[0]
            one_m_rho = 1.0 - rho

            # Fold  rho*IN + (1-rho)*LN, then gamma/beta, into one affine.
            mix_inv = rho * inv_in + one_m_rho * inv_ln
            mix_mean = rho * in_mean * inv_in + one_m_rho * ln_mean * inv_ln
            scale_ref[0] = (mix_inv * gamma).astype(scale_ref.dtype)
            bias_ref[0] = (beta - mix_mean * gamma).astype(bias_ref.dtype)

    return kernel


def _apply_kernel(x_ref, scale_ref, bias_ref, o_ref):
    # Single fused element-wise pass: out = x * scale + bias.
    o_ref[0] = (x_ref[0] * scale_ref[0] + bias_ref[0]).astype(o_ref.dtype)


def ada_iln(x_nchw, gamma, beta, rho, eps=EPS):
    """adaILN.forward(input, gamma, beta) with parameter rho.  NCHW in/out."""
    B, C, H, W = x_nchw.shape
    HW = H * W

    x3 = x_nchw.reshape(B, C, HW)                       # free reshape, lane = HW
    gamma3 = gamma.reshape(B, C, 1).astype(jnp.float32)
    beta3 = beta.reshape(B, C, 1).astype(jnp.float32)
    rho2 = rho.reshape(C, 1).astype(jnp.float32)

    T = _pick_hw_tile(HW, C)
    n_t = HW // T

    # ---- pass 1: single-sweep statistics -> folded per-channel affine -------
    scale, bias = pl.pallas_call(
        _make_stats_kernel(HW, eps),
        out_shape=(jax.ShapeDtypeStruct((B, C, 1), jnp.float32),
                   jax.ShapeDtypeStruct((B, C, 1), jnp.float32)),
        grid=(B, n_t),
        in_specs=[
            pl.BlockSpec((1, C, T), lambda b, t: (b, 0, t)),   # x tile
            pl.BlockSpec((C, 1), lambda b, t: (0, 0)),         # rho
            pl.BlockSpec((1, C, 1), lambda b, t: (b, 0, 0)),   # gamma
            pl.BlockSpec((1, C, 1), lambda b, t: (b, 0, 0)),   # beta
        ],
        out_specs=(pl.BlockSpec((1, C, 1), lambda b, t: (b, 0, 0)),
                   pl.BlockSpec((1, C, 1), lambda b, t: (b, 0, 0))),
        scratch_shapes=[pltpu.VMEM((C, 1), jnp.float32),       # sum
                        pltpu.VMEM((C, 1), jnp.float32)],      # sum of squares
        compiler_params=pltpu.CompilerParams(
            dimension_semantics=("parallel", "arbitrary")),
        cost_estimate=pl.CostEstimate(
            flops=3 * B * C * HW,
            transcendentals=2 * B * (C + 1),
            bytes_accessed=4 * B * C * (HW + 4)),
    )(x3, rho2, gamma3, beta3)

    # ---- pass 2: fused affine normalize (fully parallel, lane-dense) --------
    out3 = pl.pallas_call(
        _apply_kernel,
        out_shape=jax.ShapeDtypeStruct((B, C, HW), x_nchw.dtype),
        grid=(B, n_t),
        in_specs=[
            pl.BlockSpec((1, C, T), lambda b, t: (b, 0, t)),   # x tile
            pl.BlockSpec((1, C, 1), lambda b, t: (b, 0, 0)),   # scale
            pl.BlockSpec((1, C, 1), lambda b, t: (b, 0, 0)),   # bias
        ],
        out_specs=pl.BlockSpec((1, C, T), lambda b, t: (b, 0, t)),
        compiler_params=pltpu.CompilerParams(
            dimension_semantics=("parallel", "parallel")),
        cost_estimate=pl.CostEstimate(
            flops=2 * B * C * HW,
            transcendentals=0,
            bytes_accessed=8 * B * C * HW),
    )(x3, scale, bias)

    return out3.reshape(B, C, H, W)


def _reference(x, gamma, beta, rho, eps=EPS):
    """Pure-JAX reproduction of the PyTorch adaILN.forward (NCHW)."""
    in_mean = jnp.mean(x, axis=(2, 3), keepdims=True)
    in_var = jnp.var(x, axis=(2, 3), keepdims=True, ddof=1)
    out_in = (x - in_mean) / jnp.sqrt(in_var + eps)
    ln_mean = jnp.mean(x, axis=(1, 2, 3), keepdims=True)
    ln_var = jnp.var(x, axis=(1, 2, 3), keepdims=True, ddof=1)
    out_ln = (x - ln_mean) / jnp.sqrt(ln_var + eps)
    r = rho[None, :, None, None]
    out = r * out_in + (1.0 - r) * out_ln
    return out * gamma[:, :, None, None] + beta[:, :, None, None]


if __name__ == "__main__":
    B, C, H, W = 2, 4, 16, 16
    key = jax.random.PRNGKey(0)
    k0, k1, k2 = jax.random.split(key, 3)

    x = jax.random.normal(k0, (B, C, H, W), jnp.float32)
    gamma = jax.random.normal(k1, (B, C), jnp.float32)
    beta = jax.random.normal(k2, (B, C), jnp.float32)
    rho = jnp.full((C,), 0.9, jnp.float32)          # rho.data.fill_(0.9)

    out = jax.jit(ada_iln)(x, gamma, beta, rho)
    out = jax.block_until_ready(out)

    ref = _reference(x, gamma, beta, rho)
    assert out.shape == (B, C, H, W)
    assert bool(jnp.allclose(out, ref, atol=1e-3, rtol=1e-3)), "mismatch vs reference"
    print("KERNEL_OK")
</pallas_src>

<mosaic_0001>
module attributes {stable_mosaic.version = 11 : i64} {
  func.func @kernel(%arg0: i32, %arg1: i32, %arg2: memref<1x4x256xf32, #tpu.memory_space<vmem>>, %arg3: memref<4x1xf32, #tpu.memory_space<vmem>>, %arg4: memref<1x4x1xf32, #tpu.memory_space<vmem>>, %arg5: memref<1x4x1xf32, #tpu.memory_space<vmem>>, %arg6: memref<1x4x1xf32, #tpu.memory_space<vmem>>, %arg7: memref<1x4x1xf32, #tpu.memory_space<vmem>>, %arg8: memref<4x1xf32, #tpu.memory_space<vmem>>, %arg9: memref<4x1xf32, #tpu.memory_space<vmem>>) attributes {dimension_semantics = [#tpu.dimension_semantics<parallel>, #tpu.dimension_semantics<arbitrary>], iteration_bounds = array<i64: 2, 1>, scalar_prefetch = 0 : i64, scratch_operands = 2 : i64, tpu.core_type = #tpu.core_type<tc>, window_params = [{transform_indices = @transform_0, window_bounds = array<i64: 1, 4, 256>}, {pipeline_mode = #tpu.pipeline_mode<synchronous>, transform_indices = @transform_1, window_bounds = array<i64: 4, 1>}, {transform_indices = @transform_2, window_bounds = array<i64: 1, 4, 1>}, {transform_indices = @transform_3, window_bounds = array<i64: 1, 4, 1>}, {transform_indices = @transform_4, window_bounds = array<i64: 1, 4, 1>}, {transform_indices = @transform_5, window_bounds = array<i64: 1, 4, 1>}]} {
    %c0_i32 = arith.constant 0 : i32
    %0 = arith.cmpi eq, %arg1, %c0_i32 : i32
    %1 = arith.extui %0 : i1 to i32
    %c0_i32_0 = arith.constant 0 : i32
    %2 = arith.cmpi ne, %1, %c0_i32_0 : i32
    scf.if %2 {
      %cst_14 = arith.constant 0.000000e+00 : f32
      %19 = vector.broadcast %cst_14 : f32 to vector<4x1xf32>
      %c0_15 = arith.constant 0 : index
      %c0_16 = arith.constant 0 : index
      %20 = vector.load %arg8[%c0_15, %c0_16] : memref<4x1xf32, #tpu.memory_space<vmem>>, vector<4x1xf32>
      tpu.vector_store %arg8[%c0_15, %c0_16], %19 {strides = array<i32>} : memref<4x1xf32, #tpu.memory_space<vmem>>, vector<4x1xf32>,
      %cst_17 = arith.constant 0.000000e+00 : f32
      %21 = vector.broadcast %cst_17 : f32 to vector<4x1xf32>
      %c0_18 = arith.constant 0 : index
      %c0_19 = arith.constant 0 : index
      %22 = vector.load %arg9[%c0_18, %c0_19] : memref<4x1xf32, #tpu.memory_space<vmem>>, vector<4x1xf32>
      tpu.vector_store %arg9[%c0_18, %c0_19], %21 {strides = array<i32>} : memref<4x1xf32, #tpu.memory_space<vmem>>, vector<4x1xf32>,
    } else {
    }
    %c0 = arith.constant 0 : index
    %c0_1 = arith.constant 0 : index
    %c0_2 = arith.constant 0 : index
    %3 = vector.load %arg2[%c0, %c0_1, %c0_2] : memref<1x4x256xf32, #tpu.memory_space<vmem>>, vector<1x4x256xf32>
    %4 = vector.shape_cast %3 : vector<1x4x256xf32> to vector<4x256xf32>
    %c0_3 = arith.constant 0 : index
    %c0_4 = arith.constant 0 : index
    %5 = vector.load %arg8[%c0_3, %c0_4] : memref<4x1xf32, #tpu.memory_space<vmem>>, vector<4x1xf32>
    %cst = arith.constant dense<0.000000e+00> : vector<4xf32>
    %6 = vector.multi_reduction <add>, %4, %cst [1] : vector<4x256xf32> to vector<4xf32>
    %7 = vector.shape_cast %6 : vector<4xf32> to vector<4x1xf32>
    %8 = arith.addf %5, %7 : vector<4x1xf32>
    %c0_5 = arith.constant 0 : index
    %c0_6 = arith.constant 0 : index
    %9 = vector.load %arg8[%c0_5, %c0_6] : memref<4x1xf32, #tpu.memory_space<vmem>>, vector<4x1xf32>
    tpu.vector_store %arg8[%c0_5, %c0_6], %8 {strides = array<i32>} : memref<4x1xf32, #tpu.memory_space<vmem>>, vector<4x1xf32>,
    %c0_7 = arith.constant 0 : index
    %c0_8 = arith.constant 0 : index
    %10 = vector.load %arg9[%c0_7, %c0_8] : memref<4x1xf32, #tpu.memory_space<vmem>>, vector<4x1xf32>
    %11 = arith.mulf %4, %4 : vector<4x256xf32>
    %cst_9 = arith.constant dense<0.000000e+00> : vector<4xf32>
    %12 = vector.multi_reduction <add>, %11, %cst_9 [1] : vector<4x256xf32> to vector<4xf32>
    %13 = vector.shape_cast %12 : vector<4xf32> to vector<4x1xf32>
    %14 = arith.addf %10, %13 : vector<4x1xf32>
    %c0_10 = arith.constant 0 : index
    %c0_11 = arith.constant 0 : index
    %15 = vector.load %arg9[%c0_10, %c0_11] : memref<4x1xf32, #tpu.memory_space<vmem>>, vector<4x1xf32>
    tpu.vector_store %arg9[%c0_10, %c0_11], %14 {strides = array<i32>} : memref<4x1xf32, #tpu.memory_space<vmem>>, vector<4x1xf32>,
    %c0_i32_12 = arith.constant 0 : i32
    %16 = arith.cmpi eq, %arg1, %c0_i32_12 : i32
    %17 = arith.extui %16 : i1 to i32
    %c0_i32_13 = arith.constant 0 : i32
    %18 = arith.cmpi ne, %17, %c0_i32_13 : i32
    scf.if %18 {
      %c0_14 = arith.constant 0 : index
      %c0_15 = arith.constant 0 : index
      %19 = vector.load %arg8[%c0_14, %c0_15] : memref<4x1xf32, #tpu.memory_space<vmem>>, vector<4x1xf32>
      %c0_16 = arith.constant 0 : index
      %c0_17 = arith.constant 0 : index
      %20 = vector.load %arg9[%c0_16, %c0_17] : memref<4x1xf32, #tpu.memory_space<vmem>>, vector<4x1xf32>
      %cst_18 = arith.constant 2.560000e+02 : f32
      %21 = vector.broadcast %cst_18 : f32 to vector<4x1xf32>
      %22 = arith.divf %19, %21 : vector<4x1xf32>
      %23 = arith.mulf %19, %22 : vector<4x1xf32>
      %24 = arith.subf %20, %23 : vector<4x1xf32>
      %cst_19 = arith.constant 2.550000e+02 : f32
      %25 = vector.broadcast %cst_19 : f32 to vector<4x1xf32>
      %26 = arith.divf %24, %25 : vector<4x1xf32>
      %cst_20 = arith.constant 9.99999974E-6 : f32
      %27 = vector.broadcast %cst_20 : f32 to vector<4x1xf32>
      %28 = arith.addf %26, %27 : vector<4x1xf32>
      %29 = math.rsqrt %28 : vector<4x1xf32>
      %cst_21 = arith.constant dense<0.000000e+00> : vector<1xf32>
      %30 = vector.multi_reduction <add>, %19, %cst_21 [0] : vector<4x1xf32> to vector<1xf32>
      %31 = vector.shape_cast %30 : vector<1xf32> to vector<1x1xf32>
      %cst_22 = arith.constant dense<0.000000e+00> : vector<1xf32>
      %32 = vector.multi_reduction <add>, %20, %cst_22 [0] : vector<4x1xf32> to vector<1xf32>
      %33 = vector.shape_cast %32 : vector<1xf32> to vector<1x1xf32>
      %cst_23 = arith.constant 1.024000e+03 : f32
      %34 = vector.broadcast %cst_23 : f32 to vector<1x1xf32>
      %35 = arith.divf %31, %34 : vector<1x1xf32>
      %36 = arith.mulf %31, %35 : vector<1x1xf32>
      %37 = arith.subf %33, %36 : vector<1x1xf32>
      %cst_24 = arith.constant 1.023000e+03 : f32
      %38 = vector.broadcast %cst_24 : f32 to vector<1x1xf32>
      %39 = arith.divf %37, %38 : vector<1x1xf32>
      %cst_25 = arith.constant 9.99999974E-6 : f32
      %40 = vector.broadcast %cst_25 : f32 to vector<1x1xf32>
      %41 = arith.addf %39, %40 : vector<1x1xf32>
      %42 = math.rsqrt %41 : vector<1x1xf32>
      %c0_26 = arith.constant 0 : index
      %c0_27 = arith.constant 0 : index
      %43 = vector.load %arg3[%c0_26, %c0_27] : memref<4x1xf32, #tpu.memory_space<vmem>>, vector<4x1xf32>
      %c0_28 = arith.constant 0 : index
      %c0_29 = arith.constant 0 : index
      %c0_30 = arith.constant 0 : index
      %44 = vector.load %arg4[%c0_28, %c0_29, %c0_30] : memref<1x4x1xf32, #tpu.memory_space<vmem>>, vector<1x4x1xf32>
      %45 = vector.shape_cast %44 : vector<1x4x1xf32> to vector<4x1xf32>
      %c0_31 = arith.constant 0 : index
      %c0_32 = arith.constant 0 : index
      %c0_33 = arith.constant 0 : index
      %46 = vector.load %arg5[%c0_31, %c0_32, %c0_33] : memref<1x4x1xf32, #tpu.memory_space<vmem>>, vector<1x4x1xf32>
      %47 = vector.shape_cast %46 : vector<1x4x1xf32> to vector<4x1xf32>
      %cst_34 = arith.constant 1.000000e+00 : f32
      %48 = vector.broadcast %cst_34 : f32 to vector<4x1xf32>
      %49 = arith.subf %48, %43 : vector<4x1xf32>
      %50 = arith.mulf %43, %29 : vector<4x1xf32>
      %51 = vector.broadcast %42 : vector<1x1xf32> to vector<4x1xf32>
      %52 = arith.mulf %49, %51 : vector<4x1xf32>
      %53 = arith.addf %50, %52 : vector<4x1xf32>
      %54 = arith.mulf %43, %22 : vector<4x1xf32>
      %55 = arith.mulf %54, %29 : vector<4x1xf32>
      %56 = vector.broadcast %35 : vector<1x1xf32> to vector<4x1xf32>
      %57 = arith.mulf %49, %56 : vector<4x1xf32>
      %58 = vector.broadcast %42 : vector<1x1xf32> to vector<4x1xf32>
      %59 = arith.mulf %57, %58 : vector<4x1xf32>
      %60 = arith.addf %55, %59 : vector<4x1xf32>
      %61 = arith.mulf %53, %45 : vector<4x1xf32>
      %c0_35 = arith.constant 0 : index
      %c0_36 = arith.constant 0 : index
      %c0_37 = arith.constant 0 : index
      %62 = vector.load %arg6[%c0_35, %c0_36, %c0_37] : memref<1x4x1xf32, #tpu.memory_space<vmem>>, vector<1x4x1xf32>
      %63 = vector.shape_cast %62 : vector<1x4x1xf32> to vector<4x1xf32>
      %64 = vector.shape_cast %61 : vector<4x1xf32> to vector<1x4x1xf32>
      tpu.vector_store %arg6[%c0_35, %c0_36, %c0_37], %64 {strides = array<i32>} : memref<1x4x1xf32, #tpu.memory_space<vmem>>, vector<1x4x1xf32>,
      %65 = arith.mulf %60, %45 : vector<4x1xf32>
      %66 = arith.subf %47, %65 : vector<4x1xf32>
      %c0_38 = arith.constant 0 : index
      %c0_39 = arith.constant 0 : index
      %c0_40 = arith.constant 0 : index
      %67 = vector.load %arg7[%c0_38, %c0_39, %c0_40] : memref<1x4x1xf32, #tpu.memory_space<vmem>>, vector<1x4x1xf32>
      %68 = vector.shape_cast %67 : vector<1x4x1xf32> to vector<4x1xf32>
      %69 = vector.shape_cast %66 : vector<4x1xf32> to vector<1x4x1xf32>
      tpu.vector_store %arg7[%c0_38, %c0_39, %c0_40], %69 {strides = array<i32>} : memref<1x4x1xf32, #tpu.memory_space<vmem>>, vector<1x4x1xf32>,
    } else {
    }
    return
  }
  func.func @transform_0(%arg0: i32, %arg1: i32) -> (i32, i32, i32) {
    %c0_i32 = arith.constant 0 : i32
    %c0_i32_0 = arith.constant 0 : i32
    return %arg0, %c0_i32, %arg1 : i32, i32, i32
  }
  func.func @transform_1(%arg0: i32, %arg1: i32) -> (i32, i32) {
    %c0_i32 = arith.constant 0 : i32
    %c0_i32_0 = arith.constant 0 : i32
    %c0_i32_1 = arith.constant 0 : i32
    return %c0_i32, %c0_i32_0 : i32, i32
  }
  func.func @transform_2(%arg0: i32, %arg1: i32) -> (i32, i32, i32) {
    %c0_i32 = arith.constant 0 : i32
    %c0_i32_0 = arith.constant 0 : i32
    %c0_i32_1 = arith.constant 0 : i32
    return %arg0, %c0_i32, %c0_i32_0 : i32, i32, i32
  }
  func.func @transform_3(%arg0: i32, %arg1: i32) -> (i32, i32, i32) {
    %c0_i32 = arith.constant 0 : i32
    %c0_i32_0 = arith.constant 0 : i32
    %c0_i32_1 = arith.constant 0 : i32
    return %arg0, %c0_i32, %c0_i32_0 : i32, i32, i32
  }
  func.func @transform_4(%arg0: i32, %arg1: i32) -> (i32, i32, i32) {
    %c0_i32 = arith.constant 0 : i32
    %c0_i32_0 = arith.constant 0 : i32
    %c0_i32_1 = arith.constant 0 : i32
    return %arg0, %c0_i32, %c0_i32_0 : i32, i32, i32
  }
  func.func @transform_5(%arg0: i32, %arg1: i32) -> (i32, i32, i32) {
    %c0_i32 = arith.constant 0 : i32
    %c0_i32_0 = arith.constant 0 : i32
    %c0_i32_1 = arith.constant 0 : i32
    return %arg0, %c0_i32, %c0_i32_0 : i32, i32, i32
  }
}

module attributes {stable_mosaic.version = 11 : i64} {
  func.func @_apply_kernel(%arg0: i32, %arg1: i32, %arg2: memref<1x4x256xf32, #tpu.memory_space<vmem>>, %arg3: memref<1x4x1xf32, #tpu.memory_space<vmem>>, %arg4: memref<1x4x1xf32, #tpu.memory_space<vmem>>, %arg5: memref<1x4x256xf32, #tpu.memory_space<vmem>>) attributes {dimension_semantics = [#tpu.dimension_semantics<parallel>, #tpu.dimension_semantics<parallel>], iteration_bounds = array<i64: 2, 1>, scalar_prefetch = 0 : i64, scratch_operands = 0 : i64, tpu.core_type = #tpu.core_type<tc>, window_params = [{transform_indices = @transform_0, window_bounds = array<i64: 1, 4, 256>}, {transform_indices = @transform_1, window_bounds = array<i64: 1, 4, 1>}, {transform_indices = @transform_2, window_bounds = array<i64: 1, 4, 1>}, {transform_indices = @transform_3, window_bounds = array<i64: 1, 4, 256>}]} {
    %c0 = arith.constant 0 : index
    %c0_0 = arith.constant 0 : index
    %c0_1 = arith.constant 0 : index
    %0 = vector.load %arg2[%c0, %c0_0, %c0_1] : memref<1x4x256xf32, #tpu.memory_space<vmem>>, vector<1x4x256xf32>
    %1 = vector.shape_cast %0 : vector<1x4x256xf32> to vector<4x256xf32>
    %c0_2 = arith.constant 0 : index
    %c0_3 = arith.constant 0 : index
    %c0_4 = arith.constant 0 : index
    %2 = vector.load %arg3[%c0_2, %c0_3, %c0_4] : memref<1x4x1xf32, #tpu.memory_space<vmem>>, vector<1x4x1xf32>
    %3 = vector.shape_cast %2 : vector<1x4x1xf32> to vector<4x1xf32>
    %4 = vector.broadcast %3 : vector<4x1xf32> to vector<4x256xf32>
    %5 = arith.mulf %1, %4 : vector<4x256xf32>
    %c0_5 = arith.constant 0 : index
    %c0_6 = arith.constant 0 : index
    %c0_7 = arith.constant 0 : index
    %6 = vector.load %arg4[%c0_5, %c0_6, %c0_7] : memref<1x4x1xf32, #tpu.memory_space<vmem>>, vector<1x4x1xf32>
    %7 = vector.shape_cast %6 : vector<1x4x1xf32> to vector<4x1xf32>
    %8 = vector.broadcast %7 : vector<4x1xf32> to vector<4x256xf32>
    %9 = arith.addf %5, %8 : vector<4x256xf32>
    %c0_8 = arith.constant 0 : index
    %c0_9 = arith.constant 0 : index
    %c0_10 = arith.constant 0 : index
    %10 = vector.load %arg5[%c0_8, %c0_9, %c0_10] : memref<1x4x256xf32, #tpu.memory_space<vmem>>, vector<1x4x256xf32>
    %11 = vector.shape_cast %10 : vector<1x4x256xf32> to vector<4x256xf32>
    %12 = vector.shape_cast %9 : vector<4x256xf32> to vector<1x4x256xf32>
    tpu.vector_store %arg5[%c0_8, %c0_9, %c0_10], %12 {strides = array<i32>} : memref<1x4x256xf32, #tpu.memory_space<vmem>>, vector<1x4x256xf32>,
    return
  }
  func.func @transform_0(%arg0: i32, %arg1: i32) -> (i32, i32, i32) {
    %c0_i32 = arith.constant 0 : i32
    %c0_i32_0 = arith.constant 0 : i32
    return %arg0, %c0_i32, %arg1 : i32, i32, i32
  }
  func.func @transform_1(%arg0: i32, %arg1: i32) -> (i32, i32, i32) {
    %c0_i32 = arith.constant 0 : i32
    %c0_i32_0 = arith.constant 0 : i32
    %c0_i32_1 = arith.constant 0 : i32
    return %arg0, %c0_i32, %c0_i32_0 : i32, i32, i32
  }
  func.func @transform_2(%arg0: i32, %arg1: i32) -> (i32, i32, i32) {
    %c0_i32 = arith.constant 0 : i32
    %c0_i32_0 = arith.constant 0 : i32
    %c0_i32_1 = arith.constant 0 : i32
    return %arg0, %c0_i32, %c0_i32_0 : i32, i32, i32
  }
  func.func @transform_3(%arg0: i32, %arg1: i32) -> (i32, i32, i32) {
    %c0_i32 = arith.constant 0 : i32
    %c0_i32_0 = arith.constant 0 : i32
    return %arg0, %c0_i32, %arg1 : i32, i32, i32
  }
}

</mosaic_0001>

<llo_original>
// kernel: ada_iln.3
$region0: #{ada_iln.3}
  #allocation0 [shape = 'u32[]', space=smem, size = 0x4, offset = 0x4, fixed_abs, tag = 'smem constant byte address 0x4 - core index']
  #allocation1 [shape = 'u32[144,128]{1,0:T(1,128)}', space=vmem, size = 0x12000, scoped, tag = 'internal scratch']
  %s0 = inlined_call_operand.vmem [shape: f32[2,4,256], index: 0, kind: input, shape index: {}]
  %s1 = inlined_call_operand.vmem [shape: f32[2,4,1], index: 1, kind: input, shape index: {}]
  %s2 = inlined_call_operand.vmem [shape: f32[2,4,1], index: 2, kind: input, shape index: {}]
  %s3 = inlined_call_operand.vmem [shape: f32[2,4,256], index: 3, kind: output, shape index: {}]
  %s4 = sld [smem:[#allocation0]]
  $region45: #{ada_iln.3} parent=0
    _
  %s6 = ssub.s32 1, %s4
  %s7 = scalar_select 0, %s6, %s4
  loop: start=0, step=1, limit=4
  $region2: #{ada_iln.3} parent=0 // loop_pre_header
    _
  $region3: #{ada_iln.3} parent=0 // loop_header
    %s9 = sphi 0, %s13
    %p10 = scmp.ge.s32.totalorder %s9, 4
    %s16 = sphi 0, %s28
    %s17 = sphi 0, %s24
    %s18 = sphi 0, %s16
    %s19 = sphi 0, %s17
    %s20 = sphi 0, %s18
    %s21 = sphi 0, %s19
    %s33 = sphi 0, %s35
    %s36 = sphi 0, %s33
    %s37 = sphi 0, %s36
    %s53 = sphi 0, %s37
    %s59 = sphi 0, %s61
    %s62 = sphi 0, %s59
    %s63 = sphi 0, %s62
    %s79 = sphi 0, %s63
    %s85 = sphi 0, %s87
    %s88 = sphi 0, %s85
    %s89 = sphi 0, %s88
    %s105 = sphi 0, %s89
    %s113 = sphi 0, %s115
    %s116 = sphi 0, %s113
    %s117 = sphi 0, %s116
    %s133 = sphi 0, %s117
  $region4: #{ada_iln.3} parent=0 // loop_header_branch
    %12 = sbr.rel (%p10) target = $region8
  $region5: #{ada_iln.3} parent=0 // loop_body
    %s14 = ssub.s32 %s9, 1
    %s15 = ssub.s32 %s9, 2
    %s22 = sadd.s32 1, %s17
    %p23 = scmp.ge.s32.totalorder %s22, 1
    %s24 = scalar_select %p23, 0, %s22
    %s25 = sadd.s32 1, %s16
    %s26 = scalar_select %p23, %s25, %s16
    %p27 = scmp.ge.s32.totalorder %s26, 2
    %s28 = scalar_select %p27, 0, %s26
    %s29 = ssub.s32 %s16, %s28
    %s30 = ssub.s32 %s17, %s24
    %s31 = sor.u32 %s29, %s30
    %p32 = scmp.eq.s32.totalorder %s31, 0
    %s34 = sadd.s32 %s33, 1
    %s35 = scalar_select %p32, %s33, %s34
    %p38 = pneg %p32
    %p39 = scmp.eq.s32.totalorder %s9, 1
    %p40 = por %p38, %p39
    %p41 = scmp.ne.s32.totalorder %s33, %s36
    %p42 = scmp.eq.s32.totalorder %s9, 0
    %p43 = por %p41, %p42
    %p44 = scmp.ne.s32.totalorder %s33, %s36
    %p45 = scmp.eq.s32.totalorder %s14, 1
    %p46 = por %p44, %p45
    %p47 = scmp.ne.s32.totalorder %s36, %s37
    %p48 = scmp.eq.s32.totalorder %s14, 0
    %p49 = por %p47, %p48
    %p50 = scmp.ne.s32.totalorder %s36, %s37
    %p51 = scmp.eq.s32.totalorder %s15, 1
    %p52 = por %p50, %p51
    %p54 = scmp.ne.s32.totalorder %s37, %s53
    %p55 = scmp.eq.s32.totalorder %s15, 0
    %p56 = por %p54, %p55
    %s57 = ssub.s32 %s16, %s28
    %p58 = scmp.eq.s32.totalorder %s57, 0
    %s60 = sadd.s32 %s59, 1
    %s61 = scalar_select %p58, %s59, %s60
    %p64 = pneg %p58
    %p65 = scmp.eq.s32.totalorder %s9, 1
    %p66 = por %p64, %p65
    %p67 = scmp.ne.s32.totalorder %s59, %s62
    %p68 = scmp.eq.s32.totalorder %s9, 0
    %p69 = por %p67, %p68
    %p70 = scmp.ne.s32.totalorder %s59, %s62
    %p71 = scmp.eq.s32.totalorder %s14, 1
    %p72 = por %p70, %p71
    %p73 = scmp.ne.s32.totalorder %s62, %s63
    %p74 = scmp.eq.s32.totalorder %s14, 0
    %p75 = por %p73, %p74
    %p76 = scmp.ne.s32.totalorder %s62, %s63
    %p77 = scmp.eq.s32.totalorder %s15, 1
    %p78 = por %p76, %p77
    %p80 = scmp.ne.s32.totalorder %s63, %s79
    %p81 = scmp.eq.s32.totalorder %s15, 0
    %p82 = por %p80, %p81
    %s83 = ssub.s32 %s16, %s28
    %p84 = scmp.eq.s32.totalorder %s83, 0
    %s86 = sadd.s32 %s85, 1
    %s87 = scalar_select %p84, %s85, %s86
    %p90 = pneg %p84
    %p91 = scmp.eq.s32.totalorder %s9, 1
    %p92 = por %p90, %p91
    %p93 = scmp.ne.s32.totalorder %s85, %s88
    %p94 = scmp.eq.s32.totalorder %s9, 0
    %p95 = por %p93, %p94
    %p96 = scmp.ne.s32.totalorder %s85, %s88
    %p97 = scmp.eq.s32.totalorder %s14, 1
    %p98 = por %p96, %p97
    %p99 = scmp.ne.s32.totalorder %s88, %s89
    %p100 = scmp.eq.s32.totalorder %s14, 0
    %p101 = por %p99, %p100
    %p102 = scmp.ne.s32.totalorder %s88, %s89
    %p103 = scmp.eq.s32.totalorder %s15, 1
    %p104 = por %p102, %p103
    %p106 = scmp.ne.s32.totalorder %s89, %s105
    %p107 = scmp.eq.s32.totalorder %s15, 0
    %p108 = por %p106, %p107
    %s109 = ssub.s32 %s16, %s28
    %s110 = ssub.s32 %s17, %s24
    %s111 = sor.u32 %s109, %s110
    %p112 = scmp.eq.s32.totalorder %s111, 0
    %s114 = sadd.s32 %s113, 1
    %s115 = scalar_select %p112, %s113, %s114
    %p118 = pneg %p112
    %p119 = scmp.eq.s32.totalorder %s9, 1
    %p120 = por %p118, %p119
    %p121 = scmp.ne.s32.totalorder %s113, %s116
    %p122 = scmp.eq.s32.totalorder %s9, 0
    %p123 = por %p121, %p122
    %p124 = scmp.ne.s32.totalorder %s113, %s116
    %p125 = scmp.eq.s32.totalorder %s14, 1
    %p126 = por %p124, %p125
    %p127 = scmp.ne.s32.totalorder %s116, %s117
    %p128 = scmp.eq.s32.totalorder %s14, 0
    %p129 = por %p127, %p128
    %p130 = scmp.ne.s32.totalorder %s116, %s117
    %p131 = scmp.eq.s32.totalorder %s15, 1
    %p132 = por %p130, %p131
    %p134 = scmp.ne.s32.totalorder %s117, %s133
    %p135 = scmp.eq.s32.totalorder %s15, 0
    %p136 = por %p134, %p135
    %p137 = scmp.le.s32.totalorder 1, %s9
    %p138 = scmp.lt.s32.totalorder %s9, 3
    %p139 = pnand %p137, %p138
    %p140 = pneg %p139
    // Predicated region
    $region9: #{ada_iln.3} parent=5 // pred_check
      _
    $region10: #{ada_iln.3} parent=5 // pred_check_branch
      %142 = sbr.rel (%p139) target = $region12
    $region11: #{ada_iln.3} parent=5 // pred_region
      %s143 = ssub.s32 %s9, 1
    $region12: #{ada_iln.3} parent=5 // pred_fallthru
      _
    %p144 = scmp.lt.s32.totalorder %s9, 2
    // Predicated region
    $region13: #{ada_iln.3} parent=5 // pred_check
      %p145 = pneg %p144
    $region14: #{ada_iln.3} parent=5 // pred_check_branch
      %147 = sbr.rel (%p145) target = $region16
    $region15: #{ada_iln.3} parent=5 // pred_region
      // Predicated region
      $region17: #{ada_iln.3} parent=15 // pred_check
        %p148 = pneg %p43
      $region18: #{ada_iln.3} parent=15 // pred_check_branch
        %150 = sbr.rel (%p148) target = $region20
      $region19: #{ada_iln.3} parent=15 // pred_region
        %s151 = smul.u32 2, %s17
        %p152 = scmp.lt.s32.totalorder %s16, 1
        %s153 = scalar_select %p152, %s16, 1
        %p154 = scmp.lt.s32.totalorder %s151, 1
        %s155 = scalar_select %p154, %s151, 1
        %s156 = smul.addr %s153, 2
        %s157 = sadd.s32 %s155, %s156
        %s158 = smul.addr %s157, 4
        %s159 = scalar_lea.vmem %s0, %s158
        %s160 = smul.u32 2, %s17
      $region20: #{ada_iln.3} parent=15 // pred_fallthru
        _
      // Predicated region
      $region21: #{ada_iln.3} parent=15 // pred_check
        %p161 = pneg %p69
      $region22: #{ada_iln.3} parent=15 // pred_check_branch
        %163 = sbr.rel (%p161) target = $region24
      $region23: #{ada_iln.3} parent=15 // pred_region
        %p164 = scmp.lt.s32.totalorder %s16, 1
        %s165 = scalar_select %p164, %s16, 1
        %s166 = smul.addr %s165, 4
        %s167 = scalar_lea.vmem %s1, %s166
      $region24: #{ada_iln.3} parent=15 // pred_fallthru
        _
      // Predicated region
      $region25: #{ada_iln.3} parent=15 // pred_check
        %p168 = pneg %p95
      $region26: #{ada_iln.3} parent=15 // pred_check_branch
        %170 = sbr.rel (%p168) target = $region28
      $region27: #{ada_iln.3} parent=15 // pred_region
        %p171 = scmp.lt.s32.totalorder %s16, 1
        %s172 = scalar_select %p171, %s16, 1
        %s173 = smul.addr %s172, 4
        %s174 = scalar_lea.vmem %s2, %s173
      $region28: #{ada_iln.3} parent=15 // pred_fallthru
        _
    $region16: #{ada_iln.3} parent=5 // pred_fallthru
      _
    %p175 = scmp.le.s32.totalorder 1, %s9
    %p176 = scmp.lt.s32.totalorder %s9, 3
    %p177 = pnand %p175, %p176
    %p178 = pneg %p177
    // Predicated region
    $region29: #{ada_iln.3} parent=5 // pred_check
      _
    $region30: #{ada_iln.3} parent=5 // pred_check_branch
      %180 = sbr.rel (%p177) target = $region32
    $region31: #{ada_iln.3} parent=5 // pred_region
      %s181 = ssub.s32 %s9, 1
      %s182 = smul.u32 2, %s19
      %p183 = scmp.lt.s32.totalorder %s18, 1
      %s184 = scalar_select %p183, %s18, 1
      %p185 = scmp.lt.s32.totalorder %s182, 1
      %s186 = scalar_select %p185, %s182, 1
      %s187 = smul.addr %s184, 2
      %s188 = sadd.s32 %s186, %s187
      %s189 = smul.addr %s188, 4
      %s190 = scalar_lea.vmem %s0, %s189
      %p191 = pneg %p49
      %p192 = pneg %p46
      %p193 = scmp.lt.s32.totalorder %s18, 1
      %s194 = scalar_select %p193, %s18, 1
      %s195 = smul.addr %s194, 4
      %s196 = scalar_lea.vmem %s1, %s195
      %p197 = pneg %p75
      %p198 = pneg %p72
      %p199 = scmp.lt.s32.totalorder %s18, 1
      %s200 = scalar_select %p199, %s18, 1
      %s201 = smul.addr %s200, 4
      %s202 = scalar_lea.vmem %s2, %s201
      %p203 = pneg %p101
      %p204 = pneg %p98
      %p205 = pneg %p129
      %p206 = pneg %p126
      %s207 = smul.u32 2, %s19
      %p208 = scmp.lt.s32.totalorder %s18, 1
      %s209 = scalar_select %p208, %s18, 1
      %p210 = scmp.lt.s32.totalorder %s207, 1
      %s211 = scalar_select %p210, %s207, 1
      %s212 = smul.addr %s209, 2
      %s213 = sadd.s32 %s211, %s212
      %s214 = smul.addr %s213, 4
      %s215 = scalar_lea.vmem %s3, %s214
      %s216 = smul.u32 2, %s19
      %p217 = scmp.lt.s32.totalorder %s18, 1
      %s218 = scalar_select %p217, %s18, 1
      %p219 = scmp.lt.s32.totalorder %s216, 1
      %s220 = scalar_select %p219, %s216, 1
      %s221 = smul.addr %s218, 2
      %s222 = sadd.s32 %s220, %s221
      %s223 = smul.addr %s222, 4
      %s224 = scalar_lea.vmem %s0, %s223
      %s225 = smul.u32 2, %s19
      %p226 = scmp.lt.s32.totalorder %s18, 1
      %s227 = scalar_select %p226, %s18, 1
      %s228 = smul.addr %s227, 4
      %s229 = scalar_lea.vmem %s1, %s228
      %p230 = scmp.lt.s32.totalorder %s18, 1
      %s231 = scalar_select %p230, %s18, 1
      %s232 = smul.addr %s231, 4
      %s233 = scalar_lea.vmem %s2, %s232
      %s234 = smul.u32 2, %s19
      %p235 = scmp.lt.s32.totalorder %s18, 1
      %s236 = scalar_select %p235, %s18, 1
      %p237 = scmp.lt.s32.totalorder %s234, 1
      %s238 = scalar_select %p237, %s234, 1
      %s239 = smul.addr %s236, 2
      %s240 = sadd.s32 %s238, %s239
      %s241 = smul.addr %s240, 4
      %s242 = scalar_lea.vmem %s3, %s241
      %s243 = smul.u32 2, %s19
      %v244 = vld [vmem:[%s224] sm:$0xff]
      %v245 = vld [vmem:[%s229] sm:$0xf]
      %247 = vset.pattern.permute.xlu0 0
      %248 = vperm.xlu0 %247, %v245
      %v249 = vpop.permute.xlu0 %248
      %v251 = vunpack.c.l.s4 839922192
      %v252 = vunpack.c.0.s8 %v251
      %v253 = vlaneseq
      %v254 = vshrl.u32 %v253, 7
      %v255 = vsub.s32 %v252, %v254
      %v256 = vrot.slane %v249, %v255
      %v258 = vmul.f32 %v244, %v256
      %v259 = vld [vmem:[%s233] sm:$0xf]
      %261 = vset.pattern.permute.xlu0 0
      %262 = vperm.xlu0 %261, %v259
      %v263 = vpop.permute.xlu0 %262
      %v265 = vunpack.c.l.s4 839922192
      %v266 = vunpack.c.0.s8 %v265
      %v267 = vlaneseq
      %v268 = vshrl.u32 %v267, 7
      %v269 = vsub.s32 %v266, %v268
      %v270 = vrot.slane %v263, %v269
      %v272 = vadd.f32 %v258, %v270
      %273 = vst [vmem:[%s242] sm:$0xff] %v272
      %s274 = smul.u32 2, %s19
      %p275 = scmp.lt.s32.totalorder %s18, 1
      %s276 = scalar_select %p275, %s18, 1
      %p277 = scmp.lt.s32.totalorder %s274, 1
      %s278 = scalar_select %p277, %s274, 1
      %s279 = smul.addr %s276, 2
      %s280 = sadd.s32 %s278, %s279
      %s281 = smul.addr %s280, 4
      %s282 = scalar_lea.vmem %s3, %s281
      // Predicated region
      $region33: #{ada_iln.3} parent=31 // pred_check
        %p283 = pneg %p126
      $region34: #{ada_iln.3} parent=31 // pred_check_branch
        %285 = sbr.rel (%p283) target = $region36
      $region35: #{ada_iln.3} parent=31 // pred_region
        %s286 = smul.u32 2, %s19
      $region36: #{ada_iln.3} parent=31 // pred_fallthru
        _
    $region32: #{ada_iln.3} parent=5 // pred_fallthru
      _
    %p287 = scmp.le.s32.totalorder 2, %s9
    // Predicated region
    $region37: #{ada_iln.3} parent=5 // pred_check
      %p288 = pneg %p287
    $region38: #{ada_iln.3} parent=5 // pred_check_branch
      %290 = sbr.rel (%p288) target = $region40
    $region39: #{ada_iln.3} parent=5 // pred_region
      %s291 = ssub.s32 %s9, 2
      // Predicated region
      $region41: #{ada_iln.3} parent=39 // pred_check
        %p292 = pneg %p132
      $region42: #{ada_iln.3} parent=39 // pred_check_branch
        %294 = sbr.rel (%p292) target = $region44
      $region43: #{ada_iln.3} parent=39 // pred_region
        %s295 = smul.u32 2, %s21
        %p296 = scmp.lt.s32.totalorder %s20, 1
        %s297 = scalar_select %p296, %s20, 1
        %p298 = scmp.lt.s32.totalorder %s295, 1
        %s299 = scalar_select %p298, %s295, 1
        %s300 = smul.addr %s297, 2
        %s301 = sadd.s32 %s299, %s300
        %s302 = smul.addr %s301, 4
        %s303 = scalar_lea.vmem %s3, %s302
      $region44: #{ada_iln.3} parent=39 // pred_fallthru
        _
    $region40: #{ada_iln.3} parent=5 // pred_fallthru
      _
  $region6: #{ada_iln.3} parent=0 // loop_footer
    %s13 = sadd.s32 1, %s9
  $region7: #{ada_iln.3} parent=0 // loop_footer_branch
    %8 = sbr.rel target = $region3
  $region8: #{ada_iln.3} parent=0 // loop_exit
    _

// kernel: ada_iln.2
$region0: #{ada_iln.2}
  #allocation0 [shape = 'u32[]', space=smem, size = 0x4, offset = 0x4, fixed_abs, tag = 'smem constant byte address 0x4 - core index']
  #allocation1 [shape = 'u32[144,128]{1,0:T(1,128)}', space=vmem, size = 0x12000, scoped, tag = 'internal scratch']
  #allocation2 [shape = 'f32[4,1]{1,0:T(4,128)}', space=vmem, size = 0x800, scoped, tag = 'scratch operand']
  #allocation3 [shape = 'f32[4,1]{1,0:T(4,128)}', space=vmem, size = 0x800, scoped, tag = 'scratch operand']
  %s0 = inlined_call_operand.vmem [shape: f32[2,4,256], index: 0, kind: input, shape index: {}]
  %s1 = inlined_call_operand.vmem [shape: f32[4,1], index: 1, kind: input, shape index: {}]
  %s2 = inlined_call_operand.vmem [shape: f32[2,4,1], index: 2, kind: input, shape index: {}]
  %s3 = inlined_call_operand.vmem [shape: f32[2,4,1], index: 3, kind: input, shape index: {}]
  %s4 = inlined_call_operand.vmem [shape: f32[2,4,1], index: 4, kind: output, shape index: {0}]
  %s5 = inlined_call_operand.vmem [shape: f32[2,4,1], index: 5, kind: output, shape index: {1}]
  %6 = xla_tuple %s4, %s5
  %s7 = sld [smem:[#allocation0]]
  $region65: #{ada_iln.2} parent=0
    _
  %s9 = ssub.s32 1, %s7
  %s10 = scalar_select 0, %s9, %s7
  loop: start=0, step=1, limit=4
  $region2: #{ada_iln.2} parent=0 // loop_pre_header
    _
  $region3: #{ada_iln.2} parent=0 // loop_header
    %s12 = sphi 0, %s16
    %p13 = scmp.ge.s32.totalorder %s12, 4
    %s19 = sphi 0, %s31
    %s20 = sphi 0, %s27
    %s21 = sphi 0, %s19
    %s22 = sphi 0, %s20
    %s23 = sphi 0, %s21
    %s24 = sphi 0, %s22
    %s36 = sphi 0, %s38
    %s39 = sphi 0, %s36
    %s40 = sphi 0, %s39
    %s56 = sphi 0, %s40
    %s60 = sphi 0, %s60
    %s62 = sphi 0, %s60
    %s63 = sphi 0, %s62
    %s77 = sphi 0, %s63
    %s83 = sphi 0, %s85
    %s86 = sphi 0, %s83
    %s87 = sphi 0, %s86
    %s103 = sphi 0, %s87
    %s109 = sphi 0, %s111
    %s112 = sphi 0, %s109
    %s113 = sphi 0, %s112
    %s129 = sphi 0, %s113
    %s135 = sphi 0, %s137
    %s138 = sphi 0, %s135
    %s139 = sphi 0, %s138
    %s155 = sphi 0, %s139
    %s161 = sphi 0, %s163
    %s164 = sphi 0, %s161
    %s165 = sphi 0, %s164
    %s181 = sphi 0, %s165
  $region4: #{ada_iln.2} parent=0 // loop_header_branch
    %15 = sbr.rel (%p13) target = $region8
  $region5: #{ada_iln.2} parent=0 // loop_body
    %s17 = ssub.s32 %s12, 1
    %s18 = ssub.s32 %s12, 2
    %s25 = sadd.s32 1, %s20
    %p26 = scmp.ge.s32.totalorder %s25, 1
    %s27 = scalar_select %p26, 0, %s25
    %s28 = sadd.s32 1, %s19
    %s29 = scalar_select %p26, %s28, %s19
    %p30 = scmp.ge.s32.totalorder %s29, 2
    %s31 = scalar_select %p30, 0, %s29
    %s32 = ssub.s32 %s19, %s31
    %s33 = ssub.s32 %s20, %s27
    %s34 = sor.u32 %s32, %s33
    %p35 = scmp.eq.s32.totalorder %s34, 0
    %s37 = sadd.s32 %s36, 1
    %s38 = scalar_select %p35, %s36, %s37
    %p41 = pneg %p35
    %p42 = scmp.eq.s32.totalorder %s12, 1
    %p43 = por %p41, %p42
    %p44 = scmp.ne.s32.totalorder %s36, %s39
    %p45 = scmp.eq.s32.totalorder %s12, 0
    %p46 = por %p44, %p45
    %p47 = scmp.ne.s32.totalorder %s36, %s39
    %p48 = scmp.eq.s32.totalorder %s17, 1
    %p49 = por %p47, %p48
    %p50 = scmp.ne.s32.totalorder %s39, %s40
    %p51 = scmp.eq.s32.totalorder %s17, 0
    %p52 = por %p50, %p51
    %p53 = scmp.ne.s32.totalorder %s39, %s40
    %p54 = scmp.eq.s32.totalorder %s18, 1
    %p55 = por %p53, %p54
    %p57 = scmp.ne.s32.totalorder %s40, %s56
    %p58 = scmp.eq.s32.totalorder %s18, 0
    %p59 = por %p57, %p58
    %s61 = sadd.s32 %s60, 1
    %p64 = scmp.eq.s32.totalorder %s12, 1
    %p65 = scmp.ne.s32.totalorder %s60, %s62
    %p66 = scmp.eq.s32.totalorder %s12, 0
    %p67 = por %p65, %p66
    %p68 = scmp.ne.s32.totalorder %s60, %s62
    %p69 = scmp.eq.s32.totalorder %s17, 1
    %p70 = por %p68, %p69
    %p71 = scmp.ne.s32.totalorder %s62, %s63
    %p72 = scmp.eq.s32.totalorder %s17, 0
    %p73 = por %p71, %p72
    %p74 = scmp.ne.s32.totalorder %s62, %s63
    %p75 = scmp.eq.s32.totalorder %s18, 1
    %p76 = por %p74, %p75
    %p78 = scmp.ne.s32.totalorder %s63, %s77
    %p79 = scmp.eq.s32.totalorder %s18, 0
    %p80 = por %p78, %p79
    %s81 = ssub.s32 %s19, %s31
    %p82 = scmp.eq.s32.totalorder %s81, 0
    %s84 = sadd.s32 %s83, 1
    %s85 = scalar_select %p82, %s83, %s84
    %p88 = pneg %p82
    %p89 = scmp.eq.s32.totalorder %s12, 1
    %p90 = por %p88, %p89
    %p91 = scmp.ne.s32.totalorder %s83, %s86
    %p92 = scmp.eq.s32.totalorder %s12, 0
    %p93 = por %p91, %p92
    %p94 = scmp.ne.s32.totalorder %s83, %s86
    %p95 = scmp.eq.s32.totalorder %s17, 1
    %p96 = por %p94, %p95
    %p97 = scmp.ne.s32.totalorder %s86, %s87
    %p98 = scmp.eq.s32.totalorder %s17, 0
    %p99 = por %p97, %p98
    %p100 = scmp.ne.s32.totalorder %s86, %s87
    %p101 = scmp.eq.s32.totalorder %s18, 1
    %p102 = por %p100, %p101
    %p104 = scmp.ne.s32.totalorder %s87, %s103
    %p105 = scmp.eq.s32.totalorder %s18, 0
    %p106 = por %p104, %p105
    %s107 = ssub.s32 %s19, %s31
    %p108 = scmp.eq.s32.totalorder %s107, 0
    %s110 = sadd.s32 %s109, 1
    %s111 = scalar_select %p108, %s109, %s110
    %p114 = pneg %p108
    %p115 = scmp.eq.s32.totalorder %s12, 1
    %p116 = por %p114, %p115
    %p117 = scmp.ne.s32.totalorder %s109, %s112
    %p118 = scmp.eq.s32.totalorder %s12, 0
    %p119 = por %p117, %p118
    %p120 = scmp.ne.s32.totalorder %s109, %s112
    %p121 = scmp.eq.s32.totalorder %s17, 1
    %p122 = por %p120, %p121
    %p123 = scmp.ne.s32.totalorder %s112, %s113
    %p124 = scmp.eq.s32.totalorder %s17, 0
    %p125 = por %p123, %p124
    %p126 = scmp.ne.s32.totalorder %s112, %s113
    %p127 = scmp.eq.s32.totalorder %s18, 1
    %p128 = por %p126, %p127
    %p130 = scmp.ne.s32.totalorder %s113, %s129
    %p131 = scmp.eq.s32.totalorder %s18, 0
    %p132 = por %p130, %p131
    %s133 = ssub.s32 %s19, %s31
    %p134 = scmp.eq.s32.totalorder %s133, 0
    %s136 = sadd.s32 %s135, 1
    %s137 = scalar_select %p134, %s135, %s136
    %p140 = pneg %p134
    %p141 = scmp.eq.s32.totalorder %s12, 1
    %p142 = por %p140, %p141
    %p143 = scmp.ne.s32.totalorder %s135, %s138
    %p144 = scmp.eq.s32.totalorder %s12, 0
    %p145 = por %p143, %p144
    %p146 = scmp.ne.s32.totalorder %s135, %s138
    %p147 = scmp.eq.s32.totalorder %s17, 1
    %p148 = por %p146, %p147
    %p149 = scmp.ne.s32.totalorder %s138, %s139
    %p150 = scmp.eq.s32.totalorder %s17, 0
    %p151 = por %p149, %p150
    %p152 = scmp.ne.s32.totalorder %s138, %s139
    %p153 = scmp.eq.s32.totalorder %s18, 1
    %p154 = por %p152, %p153
    %p156 = scmp.ne.s32.totalorder %s139, %s155
    %p157 = scmp.eq.s32.totalorder %s18, 0
    %p158 = por %p156, %p157
    %s159 = ssub.s32 %s19, %s31
    %p160 = scmp.eq.s32.totalorder %s159, 0
    %s162 = sadd.s32 %s161, 1
    %s163 = scalar_select %p160, %s161, %s162
    %p166 = pneg %p160
    %p167 = scmp.eq.s32.totalorder %s12, 1
    %p168 = por %p166, %p167
    %p169 = scmp.ne.s32.totalorder %s161, %s164
    %p170 = scmp.eq.s32.totalorder %s12, 0
    %p171 = por %p169, %p170
    %p172 = scmp.ne.s32.totalorder %s161, %s164
    %p173 = scmp.eq.s32.totalorder %s17, 1
    %p174 = por %p172, %p173
    %p175 = scmp.ne.s32.totalorder %s164, %s165
    %p176 = scmp.eq.s32.totalorder %s17, 0
    %p177 = por %p175, %p176
    %p178 = scmp.ne.s32.totalorder %s164, %s165
    %p179 = scmp.eq.s32.totalorder %s18, 1
    %p180 = por %p178, %p179
    %p182 = scmp.ne.s32.totalorder %s165, %s181
    %p183 = scmp.eq.s32.totalorder %s18, 0
    %p184 = por %p182, %p183
    %p185 = scmp.le.s32.totalorder 1, %s12
    %p186 = scmp.lt.s32.totalorder %s12, 3
    %p187 = pnand %p185, %p186
    %p188 = pneg %p187
    // Predicated region
    $region9: #{ada_iln.2} parent=5 // pred_check
      _
    $region10: #{ada_iln.2} parent=5 // pred_check_branch
      %190 = sbr.rel (%p187) target = $region12
    $region11: #{ada_iln.2} parent=5 // pred_region
      %s191 = ssub.s32 %s12, 1
      // Predicated region
      $region13: #{ada_iln.2} parent=11 // pred_check
        %p192 = pneg %p73
      $region14: #{ada_iln.2} parent=11 // pred_check_branch
        %194 = sbr.rel (%p192) target = $region16
      $region15: #{ada_iln.2} parent=11 // pred_region
        _
      $region16: #{ada_iln.2} parent=11 // pred_fallthru
        _
    $region12: #{ada_iln.2} parent=5 // pred_fallthru
      _
    %p195 = scmp.lt.s32.totalorder %s12, 2
    // Predicated region
    $region17: #{ada_iln.2} parent=5 // pred_check
      %p196 = pneg %p195
    $region18: #{ada_iln.2} parent=5 // pred_check_branch
      %198 = sbr.rel (%p196) target = $region20
    $region19: #{ada_iln.2} parent=5 // pred_region
      // Predicated region
      $region21: #{ada_iln.2} parent=19 // pred_check
        %p199 = pneg %p46
      $region22: #{ada_iln.2} parent=19 // pred_check_branch
        %201 = sbr.rel (%p199) target = $region24
      $region23: #{ada_iln.2} parent=19 // pred_region
        %s202 = smul.u32 2, %s20
        %p203 = scmp.lt.s32.totalorder %s19, 1
        %s204 = scalar_select %p203, %s19, 1
        %p205 = scmp.lt.s32.totalorder %s202, 1
        %s206 = scalar_select %p205, %s202, 1
        %s207 = smul.addr %s204, 2
        %s208 = sadd.s32 %s206, %s207
        %s209 = smul.addr %s208, 4
        %s210 = scalar_lea.vmem %s0, %s209
        %s211 = smul.u32 2, %s20
      $region24: #{ada_iln.2} parent=19 // pred_fallthru
        _
      // Predicated region
      $region25: #{ada_iln.2} parent=19 // pred_check
        %p212 = pneg %p93
      $region26: #{ada_iln.2} parent=19 // pred_check_branch
        %214 = sbr.rel (%p212) target = $region28
      $region27: #{ada_iln.2} parent=19 // pred_region
        %p215 = scmp.lt.s32.totalorder %s19, 1
        %s216 = scalar_select %p215, %s19, 1
        %s217 = smul.addr %s216, 4
        %s218 = scalar_lea.vmem %s2, %s217
      $region28: #{ada_iln.2} parent=19 // pred_fallthru
        _
      // Predicated region
      $region29: #{ada_iln.2} parent=19 // pred_check
        %p219 = pneg %p119
      $region30: #{ada_iln.2} parent=19 // pred_check_branch
        %221 = sbr.rel (%p219) target = $region32
      $region31: #{ada_iln.2} parent=19 // pred_region
        %p222 = scmp.lt.s32.totalorder %s19, 1
        %s223 = scalar_select %p222, %s19, 1
        %s224 = smul.addr %s223, 4
        %s225 = scalar_lea.vmem %s3, %s224
      $region32: #{ada_iln.2} parent=19 // pred_fallthru
        _
    $region20: #{ada_iln.2} parent=5 // pred_fallthru
      _
    %p226 = scmp.le.s32.totalorder 1, %s12
    %p227 = scmp.lt.s32.totalorder %s12, 3
    %p228 = pnand %p226, %p227
    %p229 = pneg %p228
    // Predicated region
    $region33: #{ada_iln.2} parent=5 // pred_check
      _
    $region34: #{ada_iln.2} parent=5 // pred_check_branch
      %231 = sbr.rel (%p228) target = $region36
    $region35: #{ada_iln.2} parent=5 // pred_region
      %s232 = ssub.s32 %s12, 1
      %s233 = smul.u32 2, %s22
      %p234 = scmp.lt.s32.totalorder %s21, 1
      %s235 = scalar_select %p234, %s21, 1
      %p236 = scmp.lt.s32.totalorder %s233, 1
      %s237 = scalar_select %p236, %s233, 1
      %s238 = smul.addr %s235, 2
      %s239 = sadd.s32 %s237, %s238
      %s240 = smul.addr %s239, 4
      %s241 = scalar_lea.vmem %s0, %s240
      %p242 = pneg %p52
      %p243 = pneg %p49
      %p244 = pneg %p73
      %p245 = pneg %p70
      %p246 = scmp.lt.s32.totalorder %s21, 1
      %s247 = scalar_select %p246, %s21, 1
      %s248 = smul.addr %s247, 4
      %s249 = scalar_lea.vmem %s2, %s248
      %p250 = pneg %p99
      %p251 = pneg %p96
      %p252 = scmp.lt.s32.totalorder %s21, 1
      %s253 = scalar_select %p252, %s21, 1
      %s254 = smul.addr %s253, 4
      %s255 = scalar_lea.vmem %s3, %s254
      %p256 = pneg %p125
      %p257 = pneg %p122
      %p258 = pneg %p151
      %p259 = pneg %p148
      %p260 = scmp.lt.s32.totalorder %s21, 1
      %s261 = scalar_select %p260, %s21, 1
      %s262 = smul.addr %s261, 4
      %s263 = scalar_lea.vmem %s4, %s262
      %p264 = pneg %p177
      %p265 = pneg %p174
      %p266 = scmp.lt.s32.totalorder %s21, 1
      %s267 = scalar_select %p266, %s21, 1
      %s268 = smul.addr %s267, 4
      %s269 = scalar_lea.vmem %s5, %s268
      %s270 = smul.u32 2, %s22
      %p271 = scmp.lt.s32.totalorder %s21, 1
      %s272 = scalar_select %p271, %s21, 1
      %p273 = scmp.lt.s32.totalorder %s270, 1
      %s274 = scalar_select %p273, %s270, 1
      %s275 = smul.addr %s272, 2
      %s276 = sadd.s32 %s274, %s275
      %s277 = smul.addr %s276, 4
      %s278 = scalar_lea.vmem %s0, %s277
      %s279 = smul.u32 2, %s22
      %p280 = scmp.lt.s32.totalorder %s21, 1
      %s281 = scalar_select %p280, %s21, 1
      %s282 = smul.addr %s281, 4
      %s283 = scalar_lea.vmem %s2, %s282
      %p284 = scmp.lt.s32.totalorder %s21, 1
      %s285 = scalar_select %p284, %s21, 1
      %s286 = smul.addr %s285, 4
      %s287 = scalar_lea.vmem %s3, %s286
      %p288 = scmp.lt.s32.totalorder %s21, 1
      %s289 = scalar_select %p288, %s21, 1
      %s290 = smul.addr %s289, 4
      %s291 = scalar_lea.vmem %s4, %s290
      %p292 = scmp.lt.s32.totalorder %s21, 1
      %s293 = scalar_select %p292, %s21, 1
      %s294 = smul.addr %s293, 4
      %s295 = scalar_lea.vmem %s5, %s294
      %p296 = scmp.eq.s32.totalorder %s22, 0
      // Predicated region
      $region37: #{ada_iln.2} parent=35 // pred_check
        %p297 = pneg %p296
      $region38: #{ada_iln.2} parent=35 // pred_check_branch
        %299 = sbr.rel (%p297) target = $region40
      $region39: #{ada_iln.2} parent=35 // pred_region
        %vm300 = vcmask 3072
        %301 = vst.msk [vmem:[#allocation2] sm:$0xf] %vm300, 0.0
        %302 = vst.msk [vmem:[#allocation3] sm:$0xf] %vm300, 0.0
      $region40: #{ada_iln.2} parent=35 // pred_fallthru
        _
      %v303 = vld [vmem:[%s278] sm:$0xff]
      %v304 = vld [vmem:[#allocation2] sm:$0xf]
      %v306 = vcombine.high %v303, %v303
      %vm308 = vcmask 1043456
      %v309 = vsel %vm308, %v303, 0.0
      %v310 = vsel %vm308, %v306, 0.0
      %v311 = vadd.f32 %v309, %v310
      %312 = vadd.xlane.f32.xlu0 %v311
      %v313 = vpop.xlane.xlu0 %312
      %v314 = vadd.f32 %v304, %v313
      %vm315 = vcmask 3072
      %316 = vst.msk [vmem:[#allocation2] sm:$0xf] %vm315, %v314
      %v317 = vld [vmem:[#allocation3] sm:$0xf]
      %v318 = vmul.f32 %v303, %v303
      %v320 = vcombine.high %v318, %v318
      %v322 = vsel %vm308, %v318, 0.0
      %v323 = vsel %vm308, %v320, 0.0
      %v324 = vadd.f32 %v322, %v323
      %325 = vadd.xlane.f32.xlu0 %v324
      %v326 = vpop.xlane.xlu0 %325
      %v327 = vadd.f32 %v317, %v326
      %328 = vst.msk [vmem:[#allocation3] sm:$0xf] %vm315, %v327
      // Predicated region
      $region41: #{ada_iln.2} parent=35 // pred_check
        %p329 = pneg %p296
      $region42: #{ada_iln.2} parent=35 // pred_check_branch
        %331 = sbr.rel (%p329) target = $region44
      $region43: #{ada_iln.2} parent=35 // pred_region
        %v332 = vld [vmem:[#allocation2] sm:$0xf]
        %v333 = vld [vmem:[#allocation3] sm:$0xf]
        %v334 = vrcp.pop 256.0
        %v335 = vmul.f32 %v332, %v334
        %v336 = vmul.f32 %v332, %v335
        %v337 = vsub.f32 %v333, %v336
        %v338 = vrcp.pop 255.0
        %v339 = vmul.f32 %v337, %v338
        %v340 = vadd.f32 %v339, 1e-05
        %v341 = vrsqrt.pop %v340
        %v342 = vsel %vm315, %v332, 0.0
        %v343 = vrot.slane %v342, 4
        %v344 = vadd.f32 %v342, %v343
        %v345 = vrot.slane %v344, 2
        %v346 = vadd.f32 %v344, %v345
        %v347 = vrot.slane %v346, 1
        %v348 = vadd.f32 %v346, %v347
        %v349 = vsel %vm315, %v333, 0.0
        %v350 = vrot.slane %v349, 4
        %v351 = vadd.f32 %v349, %v350
        %v352 = vrot.slane %v351, 2
        %v353 = vadd.f32 %v351, %v352
        %v354 = vrot.slane %v353, 1
        %v355 = vadd.f32 %v353, %v354
        %v356 = vrcp.pop 1024.0
        %v357 = vmul.f32 %v348, %v356
        %v358 = vmul.f32 %v348, %v357
        %v359 = vsub.f32 %v355, %v358
        %v360 = vrcp.pop 1023.0
        %v361 = vmul.f32 %v359, %v360
        %v362 = vadd.f32 %v361, 1e-05
        %v363 = vrsqrt.pop %v362
        %v364 = vld [vmem:[%s1] sm:$0xf]
        %v365 = vld [vmem:[%s283] sm:$0xf]
        %v366 = vld [vmem:[%s287] sm:$0xf]
        %v367 = vsub.f32 1.0, %v364
        %v368 = vmul.f32 %v364, %v341
        %v369 = vmul.f32 %v367, %v363
        %v370 = vadd.f32 %v368, %v369
        %v371 = vmul.f32 %v364, %v335
        %v372 = vmul.f32 %v371, %v341
        %v373 = vmul.f32 %v367, %v357
        %v374 = vmul.f32 %v373, %v363
        %v375 = vadd.f32 %v372, %v374
        %v376 = vmul.f32 %v370, %v365
        %377 = vst.msk [vmem:[%s291] sm:$0xf] %vm315, %v376
        %v378 = vmul.f32 %v375, %v365
        %v379 = vsub.f32 %v366, %v378
        %380 = vst.msk [vmem:[%s295] sm:$0xf] %vm315, %v379
      $region44: #{ada_iln.2} parent=35 // pred_fallthru
        _
      %p381 = scmp.lt.s32.totalorder %s21, 1
      %s382 = scalar_select %p381, %s21, 1
      %s383 = smul.addr %s382, 4
      %s384 = scalar_lea.vmem %s4, %s383
      %p385 = scmp.lt.s32.totalorder %s21, 1
      %s386 = scalar_select %p385, %s21, 1
      %s387 = smul.addr %s386, 4
      %s388 = scalar_lea.vmem %s5, %s387
      // Predicated region
      $region45: #{ada_iln.2} parent=35 // pred_check
        %p389 = pneg %p148
      $region46: #{ada_iln.2} parent=35 // pred_check_branch
        %391 = sbr.rel (%p389) target = $region48
      $region47: #{ada_iln.2} parent=35 // pred_region
        _
      $region48: #{ada_iln.2} parent=35 // pred_fallthru
        _
      // Predicated region
      $region49: #{ada_iln.2} parent=35 // pred_check
        %p392 = pneg %p174
      $region50: #{ada_iln.2} parent=35 // pred_check_branch
        %394 = sbr.rel (%p392) target = $region52
      $region51: #{ada_iln.2} parent=35 // pred_region
        _
      $region52: #{ada_iln.2} parent=35 // pred_fallthru
        _
    $region36: #{ada_iln.2} parent=5 // pred_fallthru
      _
    %p395 = scmp.le.s32.totalorder 2, %s12
    // Predicated region
    $region53: #{ada_iln.2} parent=5 // pred_check
      %p396 = pneg %p395
    $region54: #{ada_iln.2} parent=5 // pred_check_branch
      %398 = sbr.rel (%p396) target = $region56
    $region55: #{ada_iln.2} parent=5 // pred_region
      %s399 = ssub.s32 %s12, 2
      // Predicated region
      $region57: #{ada_iln.2} parent=55 // pred_check
        %p400 = pneg %p154
      $region58: #{ada_iln.2} parent=55 // pred_check_branch
        %402 = sbr.rel (%p400) target = $region60
      $region59: #{ada_iln.2} parent=55 // pred_region
        %p403 = scmp.lt.s32.totalorder %s23, 1
        %s404 = scalar_select %p403, %s23, 1
        %s405 = smul.addr %s404, 4
        %s406 = scalar_lea.vmem %s4, %s405
      $region60: #{ada_iln.2} parent=55 // pred_fallthru
        _
      // Predicated region
      $region61: #{ada_iln.2} parent=55 // pred_check
        %p407 = pneg %p180
      $region62: #{ada_iln.2} parent=55 // pred_check_branch
        %409 = sbr.rel (%p407) target = $region64
      $region63: #{ada_iln.2} parent=55 // pred_region
        %p410 = scmp.lt.s32.totalorder %s23, 1
        %s411 = scalar_select %p410, %s23, 1
        %s412 = smul.addr %s411, 4
        %s413 = scalar_lea.vmem %s5, %s412
      $region64: #{ada_iln.2} parent=55 // pred_fallthru
        _
    $region56: #{ada_iln.2} parent=5 // pred_fallthru
      _
  $region6: #{ada_iln.2} parent=0 // loop_footer
    %s16 = sadd.s32 1, %s12
  $region7: #{ada_iln.2} parent=0 // loop_footer_branch
    %11 = sbr.rel target = $region3
  $region8: #{ada_iln.2} parent=0 // loop_exit
    _

</llo_original>
